<compile_context>
chip_gen: v7x
topology: tpu7x:2x2x1
jax: 0.10.0
libtpu: 0.0.40
codegen_flags: <defaults>
</compile_context>

<pallas_src>
import jax
import jax.numpy as jnp
from jax.experimental import pallas as pl
from jax.experimental.pallas import tpu as pltpu


SUBLANES_F32 = 8   # f32 sublane count: pad batch (M) so per-t slices are vreg-aligned
LANES = 128        # lane width: pad kernel output so the final store is unmasked


def init_params(key, input_dim, hidden_dim, output_dim):
    """Deterministic synthetic parameters in nn.Linear layout."""
    D, H, O = input_dim, hidden_dim, output_dim
    k1, k2, k3, k4 = jax.random.split(key, 4)
    return {
        "w_i2h": jax.random.normal(k1, (4 * H, D + H), jnp.float32) * 0.1,  # Linear(D+H, 4H)
        "b_i2h": jax.random.normal(k2, (4 * H,), jnp.float32) * 0.1,
        "w_h2o": jax.random.normal(k3, (O, H), jnp.float32) * 0.1,          # Linear(H, O)
        "b_h2o": jax.random.normal(k4, (O,), jnp.float32) * 0.1,
    }


def _kernel_weights(params, input_dim, hidden_dim, output_dim, o_pad):
    """Split/permute/transpose/pad weights for the kernel.

    PyTorch gate chunk order is [i, f, g, o]; the kernel uses [i, f, o, g] so a
    single sigmoid covers the first 3H columns and a single tanh the last H.
    Recurrent matmul operands are bf16 (MXU-native); biases and the small h2o
    projection stay f32.  h2o weight/bias are zero-padded to o_pad lanes so the
    kernel's output store is lane-dense (unmasked vst).
    """
    D, H, O = input_dim, hidden_dim, output_dim
    w = params["w_i2h"]                       # (4H, D+H)
    b = params["b_i2h"]                       # (4H,)
    order = jnp.array([0, 1, 3, 2])           # [i, f, g, o] -> [i, f, o, g]
    w4 = w.reshape(4, H, D + H)[order]        # (4, H, D+H)
    b4 = b.reshape(4, H)[order]               # (4, H)
    wx = jnp.transpose(w4[:, :, :D].reshape(4 * H, D)).astype(jnp.bfloat16)  # (D, 4H)
    wh = jnp.transpose(w4[:, :, D:].reshape(4 * H, H)).astype(jnp.bfloat16)  # (H, 4H)
    bias = b4.reshape(1, 4 * H).astype(jnp.float32)                          # (1, 4H)
    who = jnp.pad(jnp.transpose(params["w_h2o"]),
                  ((0, 0), (0, o_pad - O))).astype(jnp.float32)              # (H, o_pad)
    bo = jnp.pad(params["b_h2o"], (0, o_pad - O)).reshape(1, o_pad)          # (1, o_pad)
    bo = bo.astype(jnp.float32)
    return wx, wh, bias, who, bo


def lstm_forward(x, params, hidden_dim, output_dim):
    """x: (batch, seq, input_dim) f32 — returns h2o(h_T): (batch, output_dim) f32."""
    B, T, D = x.shape
    H, O = hidden_dim, output_dim
    # Pad M (batch) to the f32 sublane count: aligns per-t slices to vreg
    # boundaries and amortizes the per-step MXU latency (padded rows are free).
    B_pad = max(SUBLANES_F32, ((B + SUBLANES_F32 - 1) // SUBLANES_F32) * SUBLANES_F32)
    # Pad the kernel output to full lane width: unmasked store, sliced in wrapper.
    O_pad = max(LANES, ((O + LANES - 1) // LANES) * LANES)

    wx, wh, bias, who, bo = _kernel_weights(params, D, H, O, O_pad)

    # (B, T, D) -> (T, B_pad, D) zero-padded on batch -> (T*B_pad, D); bf16 MXU
    # operand.  Row index = t*B_pad + b, so per-t slices start on 8-row boundaries.
    x_t = jnp.transpose(x, (1, 0, 2))                        # (T, B, D)
    x_t = jnp.pad(x_t, ((0, 0), (0, B_pad - B), (0, 0)))     # (T, B_pad, D)
    x_flat = x_t.reshape(T * B_pad, D).astype(jnp.bfloat16)  # (T*B_pad, D)

    def kernel(x_ref, wx_ref, wh_ref, b_ref, who_ref, bo_ref, out_ref):
        # --- Phase 1: hoisted input projection — one MXU-dense matmul over the
        # whole sequence plus a single bias add (bias added exactly once).
        gates_x = (jnp.dot(x_ref[...], wx_ref[...],
                           preferred_element_type=jnp.float32)
                   + b_ref[...])                                  # (T*B_pad, 4H) f32

        # --- Phase 2: recurrence, statically unrolled (T small) so the LLO
        # scheduler sees all steps.  Only h @ Wh remains on the serial chain.
        wh_mat = wh_ref[...]                                      # (H, 4H) bf16, loaded once
        h = jnp.zeros((B_pad, H), jnp.float32)
        c = jnp.zeros((B_pad, H), jnp.float32)
        for t in range(T):
            # Static, 8-row-aligned slice: exactly one (8,128) f32 vreg.
            gates = gates_x[t * B_pad:(t + 1) * B_pad, :] + jnp.dot(
                h.astype(jnp.bfloat16), wh_mat,
                preferred_element_type=jnp.float32)               # (B_pad, 4H) f32
            # Gate layout [i, f, o | g]: one sigmoid span, one tanh span.
            s = jax.nn.sigmoid(gates[:, :3 * H])
            g_t = jnp.tanh(gates[:, 3 * H:])
            i_t = s[:, 0 * H:1 * H]
            f_t = s[:, 1 * H:2 * H]
            o_t = s[:, 2 * H:3 * H]
            # Cell/elementwise math in f32 (v5e VPU/EUP have no bf16 path).
            c = f_t * c + i_t * g_t
            h = o_t * jnp.tanh(c)

        # --- Phase 3: fused h2o projection into a lane-padded (B_pad, O_pad)
        # tile — single unmasked vst; no separate XLA matmul / h_T HBM round trip.
        out_ref[...] = (jnp.dot(h, who_ref[...],
                                preferred_element_type=jnp.float32)
                        + bo_ref[...])

    grid_spec = pltpu.PrefetchScalarGridSpec(
        num_scalar_prefetch=0,
        grid=(1,),  # whole problem (~20 KB) resident in VMEM; no per-step grid overhead
        in_specs=[
            pl.BlockSpec((T * B_pad, D), lambda i: (0, 0)),
            pl.BlockSpec((D, 4 * H), lambda i: (0, 0)),
            pl.BlockSpec((H, 4 * H), lambda i: (0, 0)),
            pl.BlockSpec((1, 4 * H), lambda i: (0, 0)),
            pl.BlockSpec((H, O_pad), lambda i: (0, 0)),
            pl.BlockSpec((1, O_pad), lambda i: (0, 0)),
        ],
        out_specs=pl.BlockSpec((B_pad, O_pad), lambda i: (0, 0)),
    )

    out_pad = pl.pallas_call(
        kernel,
        out_shape=jax.ShapeDtypeStruct((B_pad, O_pad), jnp.float32),
        grid_spec=grid_spec,
        compiler_params=pltpu.CompilerParams(
            dimension_semantics=("arbitrary",)),  # recurrence => sequential
    )(x_flat, wx, wh, bias, who, bo)

    return out_pad[:B, :O]


def lstm_reference(x, params, hidden_dim):
    """Pure-JAX f32 reference matching the PyTorch forward exactly."""
    B, T, D = x.shape
    H = hidden_dim
    w, bvec = params["w_i2h"], params["b_i2h"]
    wo, bo = params["w_h2o"], params["b_h2o"]
    h = jnp.zeros((B, H), jnp.float32)
    c = jnp.zeros((B, H), jnp.float32)
    out = None
    for t in range(T):
        combined = jnp.concatenate([x[:, t, :], h], axis=1)
        gates = combined @ jnp.transpose(w) + bvec
        i_t = jax.nn.sigmoid(gates[:, 0 * H:1 * H])
        f_t = jax.nn.sigmoid(gates[:, 1 * H:2 * H])
        g_t = jnp.tanh(gates[:, 2 * H:3 * H])
        o_t = jax.nn.sigmoid(gates[:, 3 * H:4 * H])
        c = f_t * c + i_t * g_t
        h = o_t * jnp.tanh(c)
        out = h @ jnp.transpose(wo) + bo
    return out


if __name__ == "__main__":
    seq_length = 8
    input_dim = 4
    hidden_dim = 32
    output_dim = 4
    batch = 2

    key = jax.random.PRNGKey(0)
    k_x, k_p = jax.random.split(key)
    x = jax.random.normal(k_x, (batch, seq_length, input_dim), jnp.float32)
    params = init_params(k_p, input_dim, hidden_dim, output_dim)

    out = lstm_forward(x, params, hidden_dim, output_dim)
    out = jax.block_until_ready(out)

    ref = lstm_reference(x, params, hidden_dim)
    assert out.shape == (batch, output_dim)
    # bf16 recurrent-matmul operands (f32 accumulation, f32 cell math) vs f32
    # reference: fine at T=8; for long sequences validate error growth or use
    # an f32 recurrent matmul (review correctness note).
    assert jnp.allclose(out, ref, atol=2e-2, rtol=2e-2), "mismatch vs reference"

    print("KERNEL_OK")
</pallas_src>

<mosaic_0001>
module attributes {stable_mosaic.version = 11 : i64} {
  func.func @kernel(%arg0: i32, %arg1: memref<64x4xbf16, #tpu.memory_space<vmem>>, %arg2: memref<4x128xbf16, #tpu.memory_space<vmem>>, %arg3: memref<32x128xbf16, #tpu.memory_space<vmem>>, %arg4: memref<1x128xf32, #tpu.memory_space<vmem>>, %arg5: memref<32x128xf32, #tpu.memory_space<vmem>>, %arg6: memref<1x128xf32, #tpu.memory_space<vmem>>, %arg7: memref<8x128xf32, #tpu.memory_space<vmem>>) attributes {dimension_semantics = [#tpu.dimension_semantics<arbitrary>], iteration_bounds = array<i64: 1>, scalar_prefetch = 0 : i64, scratch_operands = 0 : i64, tpu.core_type = #tpu.core_type<tc>, window_params = [{pipeline_mode = #tpu.pipeline_mode<synchronous>, transform_indices = @transform_0, window_bounds = array<i64: 64, 4>}, {pipeline_mode = #tpu.pipeline_mode<synchronous>, transform_indices = @transform_1, window_bounds = array<i64: 4, 128>}, {pipeline_mode = #tpu.pipeline_mode<synchronous>, transform_indices = @transform_2, window_bounds = array<i64: 32, 128>}, {pipeline_mode = #tpu.pipeline_mode<synchronous>, transform_indices = @transform_3, window_bounds = array<i64: 1, 128>}, {pipeline_mode = #tpu.pipeline_mode<synchronous>, transform_indices = @transform_4, window_bounds = array<i64: 32, 128>}, {pipeline_mode = #tpu.pipeline_mode<synchronous>, transform_indices = @transform_5, window_bounds = array<i64: 1, 128>}, {pipeline_mode = #tpu.pipeline_mode<synchronous>, transform_indices = @transform_6, window_bounds = array<i64: 8, 128>}]} {
    %c0 = arith.constant 0 : index
    %c0_0 = arith.constant 0 : index
    %0 = vector.load %arg1[%c0, %c0_0] : memref<64x4xbf16, #tpu.memory_space<vmem>>, vector<64x4xbf16>
    %c0_1 = arith.constant 0 : index
    %c0_2 = arith.constant 0 : index
    %1 = vector.load %arg2[%c0_1, %c0_2] : memref<4x128xbf16, #tpu.memory_space<vmem>>, vector<4x128xbf16>
    %cst = arith.constant dense<0.000000e+00> : vector<64x128xf32>
    %2 = tpu.matmul %0, %1, %cst {dimension_numbers = #tpu.dot_dimension_numbers<[1], [0], [0], [1], [0, 0, 1, 1], [], []>} : vector<64x4xbf16>, vector<4x128xbf16>, vector<64x128xf32> -> vector<64x128xf32>
    %c0_3 = arith.constant 0 : index
    %c0_4 = arith.constant 0 : index
    %3 = vector.load %arg4[%c0_3, %c0_4] : memref<1x128xf32, #tpu.memory_space<vmem>>, vector<1x128xf32>
    %4 = vector.broadcast %3 : vector<1x128xf32> to vector<64x128xf32>
    %5 = arith.addf %2, %4 : vector<64x128xf32>
    %c0_5 = arith.constant 0 : index
    %c0_6 = arith.constant 0 : index
    %6 = vector.load %arg3[%c0_5, %c0_6] : memref<32x128xbf16, #tpu.memory_space<vmem>>, vector<32x128xbf16>
    %cst_7 = arith.constant 0.000000e+00 : f32
    %7 = vector.broadcast %cst_7 : f32 to vector<8x32xf32>
    %cst_8 = arith.constant 0.000000e+00 : f32
    %8 = vector.broadcast %cst_8 : f32 to vector<8x32xf32>
    %9 = vector.extract_strided_slice %5 {offsets = [0, 0], sizes = [8, 128], strides = [1, 1]} : vector<64x128xf32> to vector<8x128xf32>
    %10 = arith.truncf %7 : vector<8x32xf32> to vector<8x32xbf16>
    %cst_9 = arith.constant dense<0.000000e+00> : vector<8x128xf32>
    %11 = tpu.matmul %10, %6, %cst_9 {dimension_numbers = #tpu.dot_dimension_numbers<[1], [0], [0], [1], [0, 0, 1, 1], [], []>} : vector<8x32xbf16>, vector<32x128xbf16>, vector<8x128xf32> -> vector<8x128xf32>
    %12 = arith.addf %9, %11 : vector<8x128xf32>
    %13 = vector.extract_strided_slice %12 {offsets = [0, 0], sizes = [8, 96], strides = [1, 1]} : vector<8x128xf32> to vector<8x96xf32>
    %14 = arith.negf %13 : vector<8x96xf32>
    %15 = math.exp %14 : vector<8x96xf32>
    %cst_10 = arith.constant 1.000000e+00 : f32
    %16 = vector.broadcast %cst_10 : f32 to vector<8x96xf32>
    %17 = arith.addf %16, %15 : vector<8x96xf32>
    %18 = arith.divf %16, %17 : vector<8x96xf32>
    %19 = vector.extract_strided_slice %12 {offsets = [0, 96], sizes = [8, 32], strides = [1, 1]} : vector<8x128xf32> to vector<8x32xf32>
    %20 = math.tanh %19 : vector<8x32xf32>
    %21 = vector.extract_strided_slice %18 {offsets = [0, 0], sizes = [8, 32], strides = [1, 1]} : vector<8x96xf32> to vector<8x32xf32>
    %22 = vector.extract_strided_slice %18 {offsets = [0, 32], sizes = [8, 32], strides = [1, 1]} : vector<8x96xf32> to vector<8x32xf32>
    %23 = vector.extract_strided_slice %18 {offsets = [0, 64], sizes = [8, 32], strides = [1, 1]} : vector<8x96xf32> to vector<8x32xf32>
    %24 = arith.mulf %22, %8 : vector<8x32xf32>
    %25 = arith.mulf %21, %20 : vector<8x32xf32>
    %26 = arith.addf %24, %25 : vector<8x32xf32>
    %27 = math.tanh %26 : vector<8x32xf32>
    %28 = arith.mulf %23, %27 : vector<8x32xf32>
    %29 = vector.extract_strided_slice %5 {offsets = [8, 0], sizes = [8, 128], strides = [1, 1]} : vector<64x128xf32> to vector<8x128xf32>
    %30 = arith.truncf %28 : vector<8x32xf32> to vector<8x32xbf16>
    %cst_11 = arith.constant dense<0.000000e+00> : vector<8x128xf32>
    %31 = tpu.matmul %30, %6, %cst_11 {dimension_numbers = #tpu.dot_dimension_numbers<[1], [0], [0], [1], [0, 0, 1, 1], [], []>} : vector<8x32xbf16>, vector<32x128xbf16>, vector<8x128xf32> -> vector<8x128xf32>
    %32 = arith.addf %29, %31 : vector<8x128xf32>
    %33 = vector.extract_strided_slice %32 {offsets = [0, 0], sizes = [8, 96], strides = [1, 1]} : vector<8x128xf32> to vector<8x96xf32>
    %34 = arith.negf %33 : vector<8x96xf32>
    %35 = math.exp %34 : vector<8x96xf32>
    %cst_12 = arith.constant 1.000000e+00 : f32
    %36 = vector.broadcast %cst_12 : f32 to vector<8x96xf32>
    %37 = arith.addf %36, %35 : vector<8x96xf32>
    %38 = arith.divf %36, %37 : vector<8x96xf32>
    %39 = vector.extract_strided_slice %32 {offsets = [0, 96], sizes = [8, 32], strides = [1, 1]} : vector<8x128xf32> to vector<8x32xf32>
    %40 = math.tanh %39 : vector<8x32xf32>
    %41 = vector.extract_strided_slice %38 {offsets = [0, 0], sizes = [8, 32], strides = [1, 1]} : vector<8x96xf32> to vector<8x32xf32>
    %42 = vector.extract_strided_slice %38 {offsets = [0, 32], sizes = [8, 32], strides = [1, 1]} : vector<8x96xf32> to vector<8x32xf32>
    %43 = vector.extract_strided_slice %38 {offsets = [0, 64], sizes = [8, 32], strides = [1, 1]} : vector<8x96xf32> to vector<8x32xf32>
    %44 = arith.mulf %42, %26 : vector<8x32xf32>
    %45 = arith.mulf %41, %40 : vector<8x32xf32>
    %46 = arith.addf %44, %45 : vector<8x32xf32>
    %47 = math.tanh %46 : vector<8x32xf32>
    %48 = arith.mulf %43, %47 : vector<8x32xf32>
    %49 = vector.extract_strided_slice %5 {offsets = [16, 0], sizes = [8, 128], strides = [1, 1]} : vector<64x128xf32> to vector<8x128xf32>
    %50 = arith.truncf %48 : vector<8x32xf32> to vector<8x32xbf16>
    %cst_13 = arith.constant dense<0.000000e+00> : vector<8x128xf32>
    %51 = tpu.matmul %50, %6, %cst_13 {dimension_numbers = #tpu.dot_dimension_numbers<[1], [0], [0], [1], [0, 0, 1, 1], [], []>} : vector<8x32xbf16>, vector<32x128xbf16>, vector<8x128xf32> -> vector<8x128xf32>
    %52 = arith.addf %49, %51 : vector<8x128xf32>
    %53 = vector.extract_strided_slice %52 {offsets = [0, 0], sizes = [8, 96], strides = [1, 1]} : vector<8x128xf32> to vector<8x96xf32>
    %54 = arith.negf %53 : vector<8x96xf32>
    %55 = math.exp %54 : vector<8x96xf32>
    %cst_14 = arith.constant 1.000000e+00 : f32
    %56 = vector.broadcast %cst_14 : f32 to vector<8x96xf32>
    %57 = arith.addf %56, %55 : vector<8x96xf32>
    %58 = arith.divf %56, %57 : vector<8x96xf32>
    %59 = vector.extract_strided_slice %52 {offsets = [0, 96], sizes = [8, 32], strides = [1, 1]} : vector<8x128xf32> to vector<8x32xf32>
    %60 = math.tanh %59 : vector<8x32xf32>
    %61 = vector.extract_strided_slice %58 {offsets = [0, 0], sizes = [8, 32], strides = [1, 1]} : vector<8x96xf32> to vector<8x32xf32>
    %62 = vector.extract_strided_slice %58 {offsets = [0, 32], sizes = [8, 32], strides = [1, 1]} : vector<8x96xf32> to vector<8x32xf32>
    %63 = vector.extract_strided_slice %58 {offsets = [0, 64], sizes = [8, 32], strides = [1, 1]} : vector<8x96xf32> to vector<8x32xf32>
    %64 = arith.mulf %62, %46 : vector<8x32xf32>
    %65 = arith.mulf %61, %60 : vector<8x32xf32>
    %66 = arith.addf %64, %65 : vector<8x32xf32>
    %67 = math.tanh %66 : vector<8x32xf32>
    %68 = arith.mulf %63, %67 : vector<8x32xf32>
    %69 = vector.extract_strided_slice %5 {offsets = [24, 0], sizes = [8, 128], strides = [1, 1]} : vector<64x128xf32> to vector<8x128xf32>
    %70 = arith.truncf %68 : vector<8x32xf32> to vector<8x32xbf16>
    %cst_15 = arith.constant dense<0.000000e+00> : vector<8x128xf32>
    %71 = tpu.matmul %70, %6, %cst_15 {dimension_numbers = #tpu.dot_dimension_numbers<[1], [0], [0], [1], [0, 0, 1, 1], [], []>} : vector<8x32xbf16>, vector<32x128xbf16>, vector<8x128xf32> -> vector<8x128xf32>
    %72 = arith.addf %69, %71 : vector<8x128xf32>
    %73 = vector.extract_strided_slice %72 {offsets = [0, 0], sizes = [8, 96], strides = [1, 1]} : vector<8x128xf32> to vector<8x96xf32>
    %74 = arith.negf %73 : vector<8x96xf32>
    %75 = math.exp %74 : vector<8x96xf32>
    %cst_16 = arith.constant 1.000000e+00 : f32
    %76 = vector.broadcast %cst_16 : f32 to vector<8x96xf32>
    %77 = arith.addf %76, %75 : vector<8x96xf32>
    %78 = arith.divf %76, %77 : vector<8x96xf32>
    %79 = vector.extract_strided_slice %72 {offsets = [0, 96], sizes = [8, 32], strides = [1, 1]} : vector<8x128xf32> to vector<8x32xf32>
    %80 = math.tanh %79 : vector<8x32xf32>
    %81 = vector.extract_strided_slice %78 {offsets = [0, 0], sizes = [8, 32], strides = [1, 1]} : vector<8x96xf32> to vector<8x32xf32>
    %82 = vector.extract_strided_slice %78 {offsets = [0, 32], sizes = [8, 32], strides = [1, 1]} : vector<8x96xf32> to vector<8x32xf32>
    %83 = vector.extract_strided_slice %78 {offsets = [0, 64], sizes = [8, 32], strides = [1, 1]} : vector<8x96xf32> to vector<8x32xf32>
    %84 = arith.mulf %82, %66 : vector<8x32xf32>
    %85 = arith.mulf %81, %80 : vector<8x32xf32>
    %86 = arith.addf %84, %85 : vector<8x32xf32>
    %87 = math.tanh %86 : vector<8x32xf32>
    %88 = arith.mulf %83, %87 : vector<8x32xf32>
    %89 = vector.extract_strided_slice %5 {offsets = [32, 0], sizes = [8, 128], strides = [1, 1]} : vector<64x128xf32> to vector<8x128xf32>
    %90 = arith.truncf %88 : vector<8x32xf32> to vector<8x32xbf16>
    %cst_17 = arith.constant dense<0.000000e+00> : vector<8x128xf32>
    %91 = tpu.matmul %90, %6, %cst_17 {dimension_numbers = #tpu.dot_dimension_numbers<[1], [0], [0], [1], [0, 0, 1, 1], [], []>} : vector<8x32xbf16>, vector<32x128xbf16>, vector<8x128xf32> -> vector<8x128xf32>
    %92 = arith.addf %89, %91 : vector<8x128xf32>
    %93 = vector.extract_strided_slice %92 {offsets = [0, 0], sizes = [8, 96], strides = [1, 1]} : vector<8x128xf32> to vector<8x96xf32>
    %94 = arith.negf %93 : vector<8x96xf32>
    %95 = math.exp %94 : vector<8x96xf32>
    %cst_18 = arith.constant 1.000000e+00 : f32
    %96 = vector.broadcast %cst_18 : f32 to vector<8x96xf32>
    %97 = arith.addf %96, %95 : vector<8x96xf32>
    %98 = arith.divf %96, %97 : vector<8x96xf32>
    %99 = vector.extract_strided_slice %92 {offsets = [0, 96], sizes = [8, 32], strides = [1, 1]} : vector<8x128xf32> to vector<8x32xf32>
    %100 = math.tanh %99 : vector<8x32xf32>
    %101 = vector.extract_strided_slice %98 {offsets = [0, 0], sizes = [8, 32], strides = [1, 1]} : vector<8x96xf32> to vector<8x32xf32>
    %102 = vector.extract_strided_slice %98 {offsets = [0, 32], sizes = [8, 32], strides = [1, 1]} : vector<8x96xf32> to vector<8x32xf32>
    %103 = vector.extract_strided_slice %98 {offsets = [0, 64], sizes = [8, 32], strides = [1, 1]} : vector<8x96xf32> to vector<8x32xf32>
    %104 = arith.mulf %102, %86 : vector<8x32xf32>
    %105 = arith.mulf %101, %100 : vector<8x32xf32>
    %106 = arith.addf %104, %105 : vector<8x32xf32>
    %107 = math.tanh %106 : vector<8x32xf32>
    %108 = arith.mulf %103, %107 : vector<8x32xf32>
    %109 = vector.extract_strided_slice %5 {offsets = [40, 0], sizes = [8, 128], strides = [1, 1]} : vector<64x128xf32> to vector<8x128xf32>
    %110 = arith.truncf %108 : vector<8x32xf32> to vector<8x32xbf16>
    %cst_19 = arith.constant dense<0.000000e+00> : vector<8x128xf32>
    %111 = tpu.matmul %110, %6, %cst_19 {dimension_numbers = #tpu.dot_dimension_numbers<[1], [0], [0], [1], [0, 0, 1, 1], [], []>} : vector<8x32xbf16>, vector<32x128xbf16>, vector<8x128xf32> -> vector<8x128xf32>
    %112 = arith.addf %109, %111 : vector<8x128xf32>
    %113 = vector.extract_strided_slice %112 {offsets = [0, 0], sizes = [8, 96], strides = [1, 1]} : vector<8x128xf32> to vector<8x96xf32>
    %114 = arith.negf %113 : vector<8x96xf32>
    %115 = math.exp %114 : vector<8x96xf32>
    %cst_20 = arith.constant 1.000000e+00 : f32
    %116 = vector.broadcast %cst_20 : f32 to vector<8x96xf32>
    %117 = arith.addf %116, %115 : vector<8x96xf32>
    %118 = arith.divf %116, %117 : vector<8x96xf32>
    %119 = vector.extract_strided_slice %112 {offsets = [0, 96], sizes = [8, 32], strides = [1, 1]} : vector<8x128xf32> to vector<8x32xf32>
    %120 = math.tanh %119 : vector<8x32xf32>
    %121 = vector.extract_strided_slice %118 {offsets = [0, 0], sizes = [8, 32], strides = [1, 1]} : vector<8x96xf32> to vector<8x32xf32>
    %122 = vector.extract_strided_slice %118 {offsets = [0, 32], sizes = [8, 32], strides = [1, 1]} : vector<8x96xf32> to vector<8x32xf32>
    %123 = vector.extract_strided_slice %118 {offsets = [0, 64], sizes = [8, 32], strides = [1, 1]} : vector<8x96xf32> to vector<8x32xf32>
    %124 = arith.mulf %122, %106 : vector<8x32xf32>
    %125 = arith.mulf %121, %120 : vector<8x32xf32>
    %126 = arith.addf %124, %125 : vector<8x32xf32>
    %127 = math.tanh %126 : vector<8x32xf32>
    %128 = arith.mulf %123, %127 : vector<8x32xf32>
    %129 = vector.extract_strided_slice %5 {offsets = [48, 0], sizes = [8, 128], strides = [1, 1]} : vector<64x128xf32> to vector<8x128xf32>
    %130 = arith.truncf %128 : vector<8x32xf32> to vector<8x32xbf16>
    %cst_21 = arith.constant dense<0.000000e+00> : vector<8x128xf32>
    %131 = tpu.matmul %130, %6, %cst_21 {dimension_numbers = #tpu.dot_dimension_numbers<[1], [0], [0], [1], [0, 0, 1, 1], [], []>} : vector<8x32xbf16>, vector<32x128xbf16>, vector<8x128xf32> -> vector<8x128xf32>
    %132 = arith.addf %129, %131 : vector<8x128xf32>
    %133 = vector.extract_strided_slice %132 {offsets = [0, 0], sizes = [8, 96], strides = [1, 1]} : vector<8x128xf32> to vector<8x96xf32>
    %134 = arith.negf %133 : vector<8x96xf32>
    %135 = math.exp %134 : vector<8x96xf32>
    %cst_22 = arith.constant 1.000000e+00 : f32
    %136 = vector.broadcast %cst_22 : f32 to vector<8x96xf32>
    %137 = arith.addf %136, %135 : vector<8x96xf32>
    %138 = arith.divf %136, %137 : vector<8x96xf32>
    %139 = vector.extract_strided_slice %132 {offsets = [0, 96], sizes = [8, 32], strides = [1, 1]} : vector<8x128xf32> to vector<8x32xf32>
    %140 = math.tanh %139 : vector<8x32xf32>
    %141 = vector.extract_strided_slice %138 {offsets = [0, 0], sizes = [8, 32], strides = [1, 1]} : vector<8x96xf32> to vector<8x32xf32>
    %142 = vector.extract_strided_slice %138 {offsets = [0, 32], sizes = [8, 32], strides = [1, 1]} : vector<8x96xf32> to vector<8x32xf32>
    %143 = vector.extract_strided_slice %138 {offsets = [0, 64], sizes = [8, 32], strides = [1, 1]} : vector<8x96xf32> to vector<8x32xf32>
    %144 = arith.mulf %142, %126 : vector<8x32xf32>
    %145 = arith.mulf %141, %140 : vector<8x32xf32>
    %146 = arith.addf %144, %145 : vector<8x32xf32>
    %147 = math.tanh %146 : vector<8x32xf32>
    %148 = arith.mulf %143, %147 : vector<8x32xf32>
    %149 = vector.extract_strided_slice %5 {offsets = [56, 0], sizes = [8, 128], strides = [1, 1]} : vector<64x128xf32> to vector<8x128xf32>
    %150 = arith.truncf %148 : vector<8x32xf32> to vector<8x32xbf16>
    %cst_23 = arith.constant dense<0.000000e+00> : vector<8x128xf32>
    %151 = tpu.matmul %150, %6, %cst_23 {dimension_numbers = #tpu.dot_dimension_numbers<[1], [0], [0], [1], [0, 0, 1, 1], [], []>} : vector<8x32xbf16>, vector<32x128xbf16>, vector<8x128xf32> -> vector<8x128xf32>
    %152 = arith.addf %149, %151 : vector<8x128xf32>
    %153 = vector.extract_strided_slice %152 {offsets = [0, 0], sizes = [8, 96], strides = [1, 1]} : vector<8x128xf32> to vector<8x96xf32>
    %154 = arith.negf %153 : vector<8x96xf32>
    %155 = math.exp %154 : vector<8x96xf32>
    %cst_24 = arith.constant 1.000000e+00 : f32
    %156 = vector.broadcast %cst_24 : f32 to vector<8x96xf32>
    %157 = arith.addf %156, %155 : vector<8x96xf32>
    %158 = arith.divf %156, %157 : vector<8x96xf32>
    %159 = vector.extract_strided_slice %152 {offsets = [0, 96], sizes = [8, 32], strides = [1, 1]} : vector<8x128xf32> to vector<8x32xf32>
    %160 = math.tanh %159 : vector<8x32xf32>
    %161 = vector.extract_strided_slice %158 {offsets = [0, 0], sizes = [8, 32], strides = [1, 1]} : vector<8x96xf32> to vector<8x32xf32>
    %162 = vector.extract_strided_slice %158 {offsets = [0, 32], sizes = [8, 32], strides = [1, 1]} : vector<8x96xf32> to vector<8x32xf32>
    %163 = vector.extract_strided_slice %158 {offsets = [0, 64], sizes = [8, 32], strides = [1, 1]} : vector<8x96xf32> to vector<8x32xf32>
    %164 = arith.mulf %162, %146 : vector<8x32xf32>
    %165 = arith.mulf %161, %160 : vector<8x32xf32>
    %166 = arith.addf %164, %165 : vector<8x32xf32>
    %167 = math.tanh %166 : vector<8x32xf32>
    %168 = arith.mulf %163, %167 : vector<8x32xf32>
    %c0_25 = arith.constant 0 : index
    %c0_26 = arith.constant 0 : index
    %169 = vector.load %arg5[%c0_25, %c0_26] : memref<32x128xf32, #tpu.memory_space<vmem>>, vector<32x128xf32>
    %cst_27 = arith.constant dense<0.000000e+00> : vector<8x128xf32>
    %170 = tpu.matmul %168, %169, %cst_27 {dimension_numbers = #tpu.dot_dimension_numbers<[1], [0], [0], [1], [0, 0, 1, 1], [], []>} : vector<8x32xf32>, vector<32x128xf32>, vector<8x128xf32> -> vector<8x128xf32>
    %c0_28 = arith.constant 0 : index
    %c0_29 = arith.constant 0 : index
    %171 = vector.load %arg6[%c0_28, %c0_29] : memref<1x128xf32, #tpu.memory_space<vmem>>, vector<1x128xf32>
    %172 = vector.broadcast %171 : vector<1x128xf32> to vector<8x128xf32>
    %173 = arith.addf %170, %172 : vector<8x128xf32>
    %c0_30 = arith.constant 0 : index
    %c0_31 = arith.constant 0 : index
    %174 = vector.load %arg7[%c0_30, %c0_31] : memref<8x128xf32, #tpu.memory_space<vmem>>, vector<8x128xf32>
    tpu.vector_store %arg7[%c0_30, %c0_31], %173 {strides = array<i32>} : memref<8x128xf32, #tpu.memory_space<vmem>>, vector<8x128xf32>,
    return
  }
  func.func @transform_0(%arg0: i32) -> (i32, i32) {
    %c0_i32 = arith.constant 0 : i32
    %c0_i32_0 = arith.constant 0 : i32
    %c0_i32_1 = arith.constant 0 : i32
    return %c0_i32, %c0_i32_0 : i32, i32
  }
  func.func @transform_1(%arg0: i32) -> (i32, i32) {
    %c0_i32 = arith.constant 0 : i32
    %c0_i32_0 = arith.constant 0 : i32
    %c0_i32_1 = arith.constant 0 : i32
    return %c0_i32, %c0_i32_0 : i32, i32
  }
  func.func @transform_2(%arg0: i32) -> (i32, i32) {
    %c0_i32 = arith.constant 0 : i32
    %c0_i32_0 = arith.constant 0 : i32
    %c0_i32_1 = arith.constant 0 : i32
    return %c0_i32, %c0_i32_0 : i32, i32
  }
  func.func @transform_3(%arg0: i32) -> (i32, i32) {
    %c0_i32 = arith.constant 0 : i32
    %c0_i32_0 = arith.constant 0 : i32
    %c0_i32_1 = arith.constant 0 : i32
    return %c0_i32, %c0_i32_0 : i32, i32
  }
  func.func @transform_4(%arg0: i32) -> (i32, i32) {
    %c0_i32 = arith.constant 0 : i32
    %c0_i32_0 = arith.constant 0 : i32
    %c0_i32_1 = arith.constant 0 : i32
    return %c0_i32, %c0_i32_0 : i32, i32
  }
  func.func @transform_5(%arg0: i32) -> (i32, i32) {
    %c0_i32 = arith.constant 0 : i32
    %c0_i32_0 = arith.constant 0 : i32
    %c0_i32_1 = arith.constant 0 : i32
    return %c0_i32, %c0_i32_0 : i32, i32
  }
  func.func @transform_6(%arg0: i32) -> (i32, i32) {
    %c0_i32 = arith.constant 0 : i32
    %c0_i32_0 = arith.constant 0 : i32
    %c0_i32_1 = arith.constant 0 : i32
    return %c0_i32, %c0_i32_0 : i32, i32
  }
}

</mosaic_0001>

<llo_original>
// kernel: tpu_custom_call.1
$region0: #{tpu_custom_call.1}
  #allocation0 [shape = 'u32[]', space=smem, size = 0x4, offset = 0x4, fixed_abs, tag = 'smem constant byte address 0x4 - core index']
  #allocation1 [shape = 'u32[144,128]{1,0:T(1,128)}', space=vmem, size = 0x12000, scoped, tag = 'internal scratch']
  %s0 = inlined_call_operand.vmem [shape: bf16[64,4], index: 0, kind: input, shape index: {}]
  %s1 = inlined_call_operand.hbm [shape: bf16[4,128], index: 1, kind: input, shape index: {}]
  %s2 = inlined_call_operand.vmem [shape: bf16[32,128], index: 2, kind: input, shape index: {}]
  %s3 = inlined_call_operand.vmem [shape: f32[1,128], index: 3, kind: input, shape index: {}]
  %s4 = inlined_call_operand.vmem [shape: f32[32,128], index: 4, kind: input, shape index: {}]
  %s5 = inlined_call_operand.vmem [shape: f32[1,128], index: 5, kind: input, shape index: {}]
  %s6 = inlined_call_operand.hbm [shape: f32[8,128], index: 6, kind: output, shape index: {}]
  %s7 = sld [smem:[#allocation0]]
  $region38: #{tpu_custom_call.1} parent=0
    _
  %s9 = ssub.s32 1, %s7
  %s10 = scalar_select 0, %s9, %s7
  $region1: #{tpu_custom_call.1} parent=0
    #allocation2 [shape = 'u8[1024]{0}', space=vmem, size = 0x400, scoped, tag = 'input window, operand 1, single buffered']
    #allocation3 [shape = 's32[1]{0}', space=sflag, size = 0x4, scoped, tag = 'scoped memory for tpu_custom_call.1']
    #allocation4 [shape = 's32[1]{0}', space=sflag, size = 0x4, scoped, tag = 'scoped memory for tpu_custom_call.1']
    #allocation5 [shape = 'u8[4096]{0}', space=vmem, size = 0x1000, scoped, tag = 'output window, operand 0, single buffered']
    %11 = vsyncpa [#allocation3], 0
    %12 = vsyncpa [#allocation4], 0
    // Predicated region
    $region2: #{tpu_custom_call.1} parent=1 // pred_check
      _
    $region3: #{tpu_custom_call.1} parent=1 // pred_check_branch
      %14 = sbr.rel (0) target = $region5
    $region4: #{tpu_custom_call.1} parent=1 // pred_region
      _
    $region5: #{tpu_custom_call.1} parent=1 // pred_fallthru
      _
    // Predicated region
    $region6: #{tpu_custom_call.1} parent=1 // pred_check
      _
    $region7: #{tpu_custom_call.1} parent=1 // pred_check_branch
      %16 = sbr.rel (0) target = $region9
    $region8: #{tpu_custom_call.1} parent=1 // pred_region
      %s18 = ssub.s32 32, 32
      %19 = vsyncadd [#allocation3], %s18
      %s21 = sshll.u32 [#allocation2], 4
      %s22 = int_to_ptr.vmem [resolvable:$true] %s21
      %24 = dma.hbm_to_vmem [thread:$0]  %s1, 32, %s22, [#allocation3]
    $region9: #{tpu_custom_call.1} parent=1 // pred_fallthru
      _
    // Predicated region
    $region10: #{tpu_custom_call.1} parent=1 // pred_check
      _
    $region11: #{tpu_custom_call.1} parent=1 // pred_check_branch
      %26 = sbr.rel (0) target = $region13
    $region12: #{tpu_custom_call.1} parent=1 // pred_region
      _
    $region13: #{tpu_custom_call.1} parent=1 // pred_fallthru
      _
    // Predicated region
    $region14: #{tpu_custom_call.1} parent=1 // pred_check
      _
    $region15: #{tpu_custom_call.1} parent=1 // pred_check_branch
      %28 = sbr.rel (0) target = $region17
    $region16: #{tpu_custom_call.1} parent=1 // pred_region
      _
    $region17: #{tpu_custom_call.1} parent=1 // pred_fallthru
      _
    // Predicated region
    $region18: #{tpu_custom_call.1} parent=1 // pred_check
      _
    $region19: #{tpu_custom_call.1} parent=1 // pred_check_branch
      %30 = sbr.rel (0) target = $region21
    $region20: #{tpu_custom_call.1} parent=1 // pred_region
      _
    $region21: #{tpu_custom_call.1} parent=1 // pred_fallthru
      _
    // Predicated region
    $region22: #{tpu_custom_call.1} parent=1 // pred_check
      _
    $region23: #{tpu_custom_call.1} parent=1 // pred_check_branch
      %32 = sbr.rel (0) target = $region25
    $region24: #{tpu_custom_call.1} parent=1 // pred_region
      _
    $region25: #{tpu_custom_call.1} parent=1 // pred_fallthru
      _
    // Predicated region
    $region26: #{tpu_custom_call.1} parent=1 // pred_check
      _
    $region27: #{tpu_custom_call.1} parent=1 // pred_check_branch
      %34 = sbr.rel (0) target = $region29
    $region28: #{tpu_custom_call.1} parent=1 // pred_region
      %35 = dma.done [#allocation3], 32
    $region29: #{tpu_custom_call.1} parent=1 // pred_fallthru
      _
    %v37 = vld [vmem:[%s0] sm:$0xf]
    %v38 = vld [vmem:[%s0 + $0x4] sm:$0xf]
    %v39 = vld [vmem:[%s0 + $0x8] sm:$0xf]
    %v40 = vld [vmem:[%s0 + $0xc] sm:$0xf]
    %v41 = vld [vmem:[%s0 + $0x10] sm:$0xf]
    %v42 = vld [vmem:[%s0 + $0x14] sm:$0xf]
    %v43 = vld [vmem:[%s0 + $0x18] sm:$0xf]
    %v44 = vld [vmem:[%s0 + $0x1c] sm:$0xf]
    %v45 = vld [vmem:[#allocation2] sm:$0x3]
    %v46 = vld [vmem:[%s3] sm:$0x1]
    %v48 = vlaneseq
    %v49 = vshrl.u32 %v48, 7
    %v50 = vsub.s32 0, %v49
    %v51 = vrot.slane %v46, %v50
    %v61 = vunpack.c.l.b16 %v37
    %v62 = vunpack.c.l.b16 %v38
    %v63 = vunpack.c.l.b16 %v39
    %v64 = vunpack.c.l.b16 %v40
    %v65 = vunpack.c.l.b16 %v41
    %v66 = vunpack.c.l.b16 %v42
    %v67 = vunpack.c.l.b16 %v43
    %v68 = vunpack.c.l.b16 %v44
    %v69 = vpack.c.b16 %v62, %v61
    %v70 = vpack.c.b16 %v64, %v63
    %v71 = vpack.c.b16 %v66, %v65
    %v72 = vpack.c.b16 %v68, %v67
    %vm73 = vcmask 31744
    %v75 = vsel %vm73, %v69, 0
    %v78 = vsel %vm73, %v70, 0
    %v81 = vsel %vm73, %v71, 0
    %v84 = vsel %vm73, %v72, 0
    %vm86 = vcmask 1041408
    %v88 = vsel %vm86, %v45, 0
    %90 = vmatprep.subr.bf16.mxu0 0
    %91 = vmatpush1.bf16.msra.mxu0 %v88
    %92 = vmatprep.subr.bf16.mxu0 0
    %93 = vmatpush1.bf16.msra.mxu0 0
    %94 = vmatprep.subr.bf16.mxu0 0
    %95 = vmatpush1.bf16.msra.mxu0 0
    %96 = vmatprep.subr.bf16.mxu0 0
    %97 = vmatpush1.bf16.msra.mxu0 0
    %98 = vmatprep.subr.bf16.mxu0 0
    %99 = vmatpush1.bf16.msra.mxu0 0
    %100 = vmatprep.subr.bf16.mxu0 0
    %101 = vmatpush1.bf16.msra.mxu0 0
    %102 = vmatprep.subr.bf16.mxu0 0
    %103 = vmatpush1.bf16.msra.mxu0 0
    %104 = vmatprep.subr.bf16.mxu0 0
    %105 = vmatpush1.bf16.msra.mxu0 0
    %106 = vmatprep.subr.bf16.mxu0 0
    %107 = vmatpush1.bf16.msra.mxu0 0
    %108 = vmatprep.subr.bf16.mxu0 0
    %109 = vmatpush1.bf16.msra.mxu0 0
    %110 = vmatprep.subr.bf16.mxu0 0
    %111 = vmatpush1.bf16.msra.mxu0 0
    %112 = vmatprep.subr.bf16.mxu0 0
    %113 = vmatpush1.bf16.msra.mxu0 0
    %114 = vmatprep.subr.bf16.mxu0 0
    %115 = vmatpush1.bf16.msra.mxu0 0
    %116 = vmatprep.subr.bf16.mxu0 0
    %117 = vmatpush1.bf16.msra.mxu0 0
    %118 = vmatprep.subr.bf16.mxu0 0
    %119 = vmatpush1.bf16.msra.mxu0 0
    %120 = vmatprep.subr.bf16.mxu0 0
    %121 = vmatpush1.bf16.msra.mxu0 0
    %122 = vmatprep.mubr.bf16.mxu0 0
    %123 = vmatmul.mubr.bf16.gmra.mrb[0].mxu0 %v75
    %v124 = vpop.f32.mrb[0].mxu0
    %v125 = vadd.f32 %v51, %v124
    %v126 = vpop.f32.mrb[0].mxu0
    %v127 = vpop.f32.mrb[0].mxu0
    %v128 = vadd.f32 %v51, %v127
    %v129 = vpop.f32.mrb[0].mxu0
    %130 = vmatprep.mubr.bf16.mxu0 0
    %131 = vmatmul.mubr.bf16.gmra.mrb[0].mxu0 %v78
    %v132 = vpop.f32.mrb[0].mxu0
    %v133 = vadd.f32 %v51, %v132
    %v134 = vpop.f32.mrb[0].mxu0
    %v135 = vpop.f32.mrb[0].mxu0
    %v136 = vadd.f32 %v51, %v135
    %v137 = vpop.f32.mrb[0].mxu0
    %138 = vmatprep.mubr.bf16.mxu0 0
    %139 = vmatmul.mubr.bf16.gmra.mrb[0].mxu0 %v81
    %v140 = vpop.f32.mrb[0].mxu0
    %v141 = vadd.f32 %v51, %v140
    %v142 = vpop.f32.mrb[0].mxu0
    %v143 = vpop.f32.mrb[0].mxu0
    %v144 = vadd.f32 %v51, %v143
    %v145 = vpop.f32.mrb[0].mxu0
    %146 = vmatprep.mubr.bf16.mxu0 0
    %147 = vmatmul.mubr.bf16.gmra.mrb[0].mxu0 %v84
    %v148 = vpop.f32.mrb[0].mxu0
    %v149 = vadd.f32 %v51, %v148
    %v150 = vpop.f32.mrb[0].mxu0
    %v151 = vpop.f32.mrb[0].mxu0
    %v152 = vadd.f32 %v51, %v151
    %v153 = vpop.f32.mrb[0].mxu0
    %154 = vdwg.mxu0
    %v155 = vld [vmem:[%s2] sm:$0xf]
    %v156 = vld [vmem:[%s2 + $0x4] sm:$0xf]
    %v157 = vld [vmem:[%s2 + $0x8] sm:$0xf]
    %v158 = vld [vmem:[%s2 + $0xc] sm:$0xf]
    %v163 = vunpack.c.l.b16 %v155
    %v164 = vunpack.c.l.b16 %v156
    %v165 = vunpack.c.l.b16 %v157
    %v166 = vunpack.c.l.b16 %v158
    %v167 = vpack.c.b16 %v164, %v163
    %v168 = vpack.c.b16 %v166, %v165
    %vm171 = vcmask 261120
    %v173 = vsel %vm171, 0, 0
    %175 = vmatprep.subr.bf16.mxu0 0
    %176 = vmatpush1.bf16.msra.mxu0 %v167
    %177 = vmatprep.subr.bf16.mxu0 0
    %178 = vmatpush1.bf16.msra.mxu0 %v168
    %179 = vmatprep.subr.bf16.mxu0 0
    %180 = vmatpush1.bf16.msra.mxu0 0
    %181 = vmatprep.subr.bf16.mxu0 0
    %182 = vmatpush1.bf16.msra.mxu0 0
    %183 = vmatprep.subr.bf16.mxu0 0
    %184 = vmatpush1.bf16.msra.mxu0 0
    %185 = vmatprep.subr.bf16.mxu0 0
    %186 = vmatpush1.bf16.msra.mxu0 0
    %187 = vmatprep.subr.bf16.mxu0 0
    %188 = vmatpush1.bf16.msra.mxu0 0
    %189 = vmatprep.subr.bf16.mxu0 0
    %190 = vmatpush1.bf16.msra.mxu0 0
    %191 = vmatprep.subr.bf16.mxu0 0
    %192 = vmatpush1.bf16.msra.mxu0 0
    %193 = vmatprep.subr.bf16.mxu0 0
    %194 = vmatpush1.bf16.msra.mxu0 0
    %195 = vmatprep.subr.bf16.mxu0 0
    %196 = vmatpush1.bf16.msra.mxu0 0
    %197 = vmatprep.subr.bf16.mxu0 0
    %198 = vmatpush1.bf16.msra.mxu0 0
    %199 = vmatprep.subr.bf16.mxu0 0
    %200 = vmatpush1.bf16.msra.mxu0 0
    %201 = vmatprep.subr.bf16.mxu0 0
    %202 = vmatpush1.bf16.msra.mxu0 0
    %203 = vmatprep.subr.bf16.mxu0 0
    %204 = vmatpush1.bf16.msra.mxu0 0
    %205 = vmatprep.subr.bf16.mxu0 0
    %206 = vmatpush1.bf16.msra.mxu0 0
    %207 = vmatprep.mubr.bf16.mxu0 0
    %208 = vmatmul.mubr.bf16.gmra.mrb[0].mxu0 %v173
    %v209 = vpop.f32.mrb[0].mxu0
    %v210 = vadd.f32 0.0, %v209
    %v211 = vpop.f32.mrb[0].mxu0
    %v212 = vpop.f32.mrb[0].mxu0
    %v213 = vpop.f32.mrb[0].mxu0
    %214 = vdwg.mxu0
    %v215 = vadd.f32 %v125, %v210
    %v216 = vxor.u32 %v215, 2147483648
    %v217 = vmul.f32 %v216, 1.442695
    %v218 = vpow.pop %v217
    %v219 = vadd.f32 %v218, 1.0
    %v220 = vrcp.pop %v219
    %v221 = vmul.f32 1.0, %v220
    %v222 = vtanh.pop %v215
    %v223 = vmul.f32 %v221, 0.0
    %225 = vrot.lane.b32.xlu0 %v222, 32
    %v226 = vpop.permute.xlu0 %225
    %v228 = vmul.f32 %v221, %v226
    %230 = vrot.lane.b32.xlu0 %v228, 32
    %v231 = vpop.permute.xlu0 %230
    %v233 = vadd.f32 %v223, %v231
    %v234 = vtanh.pop %v233
    %236 = vrot.lane.b32.xlu0 %v234, 32
    %v237 = vpop.permute.xlu0 %236
    %v239 = vmul.f32 %v221, %v237
    %v240 = vpack.c.bf16 %v239, %v239
    %242 = vrot.lane.b32.xlu0 %v240, 64
    %v243 = vpop.permute.xlu0 %242
    %v245 = vsel %vm171, %v243, 0
    %247 = vmatprep.subr.bf16.mxu0 0
    %248 = vmatpush1.bf16.msra.mxu0 %v167
    %249 = vmatprep.subr.bf16.mxu0 0
    %250 = vmatpush1.bf16.msra.mxu0 %v168
    %251 = vmatprep.subr.bf16.mxu0 0
    %252 = vmatpush1.bf16.msra.mxu0 0
    %253 = vmatprep.subr.bf16.mxu0 0
    %254 = vmatpush1.bf16.msra.mxu0 0
    %255 = vmatprep.subr.bf16.mxu0 0
    %256 = vmatpush1.bf16.msra.mxu0 0
    %257 = vmatprep.subr.bf16.mxu0 0
    %258 = vmatpush1.bf16.msra.mxu0 0
    %259 = vmatprep.subr.bf16.mxu0 0
    %260 = vmatpush1.bf16.msra.mxu0 0
    %261 = vmatprep.subr.bf16.mxu0 0
    %262 = vmatpush1.bf16.msra.mxu0 0
    %263 = vmatprep.subr.bf16.mxu0 0
    %264 = vmatpush1.bf16.msra.mxu0 0
    %265 = vmatprep.subr.bf16.mxu0 0
    %266 = vmatpush1.bf16.msra.mxu0 0
    %267 = vmatprep.subr.bf16.mxu0 0
    %268 = vmatpush1.bf16.msra.mxu0 0
    %269 = vmatprep.subr.bf16.mxu0 0
    %270 = vmatpush1.bf16.msra.mxu0 0
    %271 = vmatprep.subr.bf16.mxu0 0
    %272 = vmatpush1.bf16.msra.mxu0 0
    %273 = vmatprep.subr.bf16.mxu0 0
    %274 = vmatpush1.bf16.msra.mxu0 0
    %275 = vmatprep.subr.bf16.mxu0 0
    %276 = vmatpush1.bf16.msra.mxu0 0
    %277 = vmatprep.subr.bf16.mxu0 0
    %278 = vmatpush1.bf16.msra.mxu0 0
    %279 = vmatprep.mubr.bf16.mxu0 0
    %280 = vmatmul.mubr.bf16.gmra.mrb[0].mxu0 %v245
    %v281 = vpop.f32.mrb[0].mxu0
    %v282 = vadd.f32 0.0, %v281
    %v283 = vpop.f32.mrb[0].mxu0
    %v284 = vpop.f32.mrb[0].mxu0
    %v285 = vpop.f32.mrb[0].mxu0
    %286 = vdwg.mxu0
    %v287 = vadd.f32 %v128, %v282
    %v288 = vxor.u32 %v287, 2147483648
    %v289 = vmul.f32 %v288, 1.442695
    %v290 = vpow.pop %v289
    %v291 = vadd.f32 %v290, 1.0
    %v292 = vrcp.pop %v291
    %v293 = vmul.f32 1.0, %v292
    %v294 = vtanh.pop %v287
    %v295 = vmul.f32 %v293, %v233
    %297 = vrot.lane.b32.xlu0 %v294, 32
    %v298 = vpop.permute.xlu0 %297
    %v300 = vmul.f32 %v293, %v298
    %302 = vrot.lane.b32.xlu0 %v300, 32
    %v303 = vpop.permute.xlu0 %302
    %v305 = vadd.f32 %v295, %v303
    %v306 = vtanh.pop %v305
    %308 = vrot.lane.b32.xlu0 %v306, 32
    %v309 = vpop.permute.xlu0 %308
    %v311 = vmul.f32 %v293, %v309
    %v312 = vpack.c.bf16 %v311, %v311
    %314 = vrot.lane.b32.xlu0 %v312, 64
    %v315 = vpop.permute.xlu0 %314
    %v317 = vsel %vm171, %v315, 0
    %319 = vmatprep.subr.bf16.mxu0 0
    %320 = vmatpush1.bf16.msra.mxu0 %v167
    %321 = vmatprep.subr.bf16.mxu0 0
    %322 = vmatpush1.bf16.msra.mxu0 %v168
    %323 = vmatprep.subr.bf16.mxu0 0
    %324 = vmatpush1.bf16.msra.mxu0 0
    %325 = vmatprep.subr.bf16.mxu0 0
    %326 = vmatpush1.bf16.msra.mxu0 0
    %327 = vmatprep.subr.bf16.mxu0 0
    %328 = vmatpush1.bf16.msra.mxu0 0
    %329 = vmatprep.subr.bf16.mxu0 0
    %330 = vmatpush1.bf16.msra.mxu0 0
    %331 = vmatprep.subr.bf16.mxu0 0
    %332 = vmatpush1.bf16.msra.mxu0 0
    %333 = vmatprep.subr.bf16.mxu0 0
    %334 = vmatpush1.bf16.msra.mxu0 0
    %335 = vmatprep.subr.bf16.mxu0 0
    %336 = vmatpush1.bf16.msra.mxu0 0
    %337 = vmatprep.subr.bf16.mxu0 0
    %338 = vmatpush1.bf16.msra.mxu0 0
    %339 = vmatprep.subr.bf16.mxu0 0
    %340 = vmatpush1.bf16.msra.mxu0 0
    %341 = vmatprep.subr.bf16.mxu0 0
    %342 = vmatpush1.bf16.msra.mxu0 0
    %343 = vmatprep.subr.bf16.mxu0 0
    %344 = vmatpush1.bf16.msra.mxu0 0
    %345 = vmatprep.subr.bf16.mxu0 0
    %346 = vmatpush1.bf16.msra.mxu0 0
    %347 = vmatprep.subr.bf16.mxu0 0
    %348 = vmatpush1.bf16.msra.mxu0 0
    %349 = vmatprep.subr.bf16.mxu0 0
    %350 = vmatpush1.bf16.msra.mxu0 0
    %351 = vmatprep.mubr.bf16.mxu0 0
    %352 = vmatmul.mubr.bf16.gmra.mrb[0].mxu0 %v317
    %v353 = vpop.f32.mrb[0].mxu0
    %v354 = vadd.f32 0.0, %v353
    %v355 = vpop.f32.mrb[0].mxu0
    %v356 = vpop.f32.mrb[0].mxu0
    %v357 = vpop.f32.mrb[0].mxu0
    %358 = vdwg.mxu0
    %v359 = vadd.f32 %v133, %v354
    %v360 = vxor.u32 %v359, 2147483648
    %v361 = vmul.f32 %v360, 1.442695
    %v362 = vpow.pop %v361
    %v363 = vadd.f32 %v362, 1.0
    %v364 = vrcp.pop %v363
    %v365 = vmul.f32 1.0, %v364
    %v366 = vtanh.pop %v359
    %v367 = vmul.f32 %v365, %v305
    %369 = vrot.lane.b32.xlu0 %v366, 32
    %v370 = vpop.permute.xlu0 %369
    %v372 = vmul.f32 %v365, %v370
    %374 = vrot.lane.b32.xlu0 %v372, 32
    %v375 = vpop.permute.xlu0 %374
    %v377 = vadd.f32 %v367, %v375
    %v378 = vtanh.pop %v377
    %380 = vrot.lane.b32.xlu0 %v378, 32
    %v381 = vpop.permute.xlu0 %380
    %v383 = vmul.f32 %v365, %v381
    %v384 = vpack.c.bf16 %v383, %v383
    %386 = vrot.lane.b32.xlu0 %v384, 64
    %v387 = vpop.permute.xlu0 %386
    %v389 = vsel %vm171, %v387, 0
    %391 = vmatprep.subr.bf16.mxu0 0
    %392 = vmatpush1.bf16.msra.mxu0 %v167
    %393 = vmatprep.subr.bf16.mxu0 0
    %394 = vmatpush1.bf16.msra.mxu0 %v168
    %395 = vmatprep.subr.bf16.mxu0 0
    %396 = vmatpush1.bf16.msra.mxu0 0
    %397 = vmatprep.subr.bf16.mxu0 0
    %398 = vmatpush1.bf16.msra.mxu0 0
    %399 = vmatprep.subr.bf16.mxu0 0
    %400 = vmatpush1.bf16.msra.mxu0 0
    %401 = vmatprep.subr.bf16.mxu0 0
    %402 = vmatpush1.bf16.msra.mxu0 0
    %403 = vmatprep.subr.bf16.mxu0 0
    %404 = vmatpush1.bf16.msra.mxu0 0
    %405 = vmatprep.subr.bf16.mxu0 0
    %406 = vmatpush1.bf16.msra.mxu0 0
    %407 = vmatprep.subr.bf16.mxu0 0
    %408 = vmatpush1.bf16.msra.mxu0 0
    %409 = vmatprep.subr.bf16.mxu0 0
    %410 = vmatpush1.bf16.msra.mxu0 0
    %411 = vmatprep.subr.bf16.mxu0 0
    %412 = vmatpush1.bf16.msra.mxu0 0
    %413 = vmatprep.subr.bf16.mxu0 0
    %414 = vmatpush1.bf16.msra.mxu0 0
    %415 = vmatprep.subr.bf16.mxu0 0
    %416 = vmatpush1.bf16.msra.mxu0 0
    %417 = vmatprep.subr.bf16.mxu0 0
    %418 = vmatpush1.bf16.msra.mxu0 0
    %419 = vmatprep.subr.bf16.mxu0 0
    %420 = vmatpush1.bf16.msra.mxu0 0
    %421 = vmatprep.subr.bf16.mxu0 0
    %422 = vmatpush1.bf16.msra.mxu0 0
    %423 = vmatprep.mubr.bf16.mxu0 0
    %424 = vmatmul.mubr.bf16.gmra.mrb[0].mxu0 %v389
    %v425 = vpop.f32.mrb[0].mxu0
    %v426 = vadd.f32 0.0, %v425
    %v427 = vpop.f32.mrb[0].mxu0
    %v428 = vpop.f32.mrb[0].mxu0
    %v429 = vpop.f32.mrb[0].mxu0
    %430 = vdwg.mxu0
    %v431 = vadd.f32 %v136, %v426
    %v432 = vxor.u32 %v431, 2147483648
    %v433 = vmul.f32 %v432, 1.442695
    %v434 = vpow.pop %v433
    %v435 = vadd.f32 %v434, 1.0
    %v436 = vrcp.pop %v435
    %v437 = vmul.f32 1.0, %v436
    %v438 = vtanh.pop %v431
    %v439 = vmul.f32 %v437, %v377
    %441 = vrot.lane.b32.xlu0 %v438, 32
    %v442 = vpop.permute.xlu0 %441
    %v444 = vmul.f32 %v437, %v442
    %446 = vrot.lane.b32.xlu0 %v444, 32
    %v447 = vpop.permute.xlu0 %446
    %v449 = vadd.f32 %v439, %v447
    %v450 = vtanh.pop %v449
    %452 = vrot.lane.b32.xlu0 %v450, 32
    %v453 = vpop.permute.xlu0 %452
    %v455 = vmul.f32 %v437, %v453
    %v456 = vpack.c.bf16 %v455, %v455
    %458 = vrot.lane.b32.xlu0 %v456, 64
    %v459 = vpop.permute.xlu0 %458
    %v461 = vsel %vm171, %v459, 0
    %463 = vmatprep.subr.bf16.mxu0 0
    %464 = vmatpush1.bf16.msra.mxu0 %v167
    %465 = vmatprep.subr.bf16.mxu0 0
    %466 = vmatpush1.bf16.msra.mxu0 %v168
    %467 = vmatprep.subr.bf16.mxu0 0
    %468 = vmatpush1.bf16.msra.mxu0 0
    %469 = vmatprep.subr.bf16.mxu0 0
    %470 = vmatpush1.bf16.msra.mxu0 0
    %471 = vmatprep.subr.bf16.mxu0 0
    %472 = vmatpush1.bf16.msra.mxu0 0
    %473 = vmatprep.subr.bf16.mxu0 0
    %474 = vmatpush1.bf16.msra.mxu0 0
    %475 = vmatprep.subr.bf16.mxu0 0
    %476 = vmatpush1.bf16.msra.mxu0 0
    %477 = vmatprep.subr.bf16.mxu0 0
    %478 = vmatpush1.bf16.msra.mxu0 0
    %479 = vmatprep.subr.bf16.mxu0 0
    %480 = vmatpush1.bf16.msra.mxu0 0
    %481 = vmatprep.subr.bf16.mxu0 0
    %482 = vmatpush1.bf16.msra.mxu0 0
    %483 = vmatprep.subr.bf16.mxu0 0
    %484 = vmatpush1.bf16.msra.mxu0 0
    %485 = vmatprep.subr.bf16.mxu0 0
    %486 = vmatpush1.bf16.msra.mxu0 0
    %487 = vmatprep.subr.bf16.mxu0 0
    %488 = vmatpush1.bf16.msra.mxu0 0
    %489 = vmatprep.subr.bf16.mxu0 0
    %490 = vmatpush1.bf16.msra.mxu0 0
    %491 = vmatprep.subr.bf16.mxu0 0
    %492 = vmatpush1.bf16.msra.mxu0 0
    %493 = vmatprep.subr.bf16.mxu0 0
    %494 = vmatpush1.bf16.msra.mxu0 0
    %495 = vmatprep.mubr.bf16.mxu0 0
    %496 = vmatmul.mubr.bf16.gmra.mrb[0].mxu0 %v461
    %v497 = vpop.f32.mrb[0].mxu0
    %v498 = vadd.f32 0.0, %v497
    %v499 = vpop.f32.mrb[0].mxu0
    %v500 = vpop.f32.mrb[0].mxu0
    %v501 = vpop.f32.mrb[0].mxu0
    %502 = vdwg.mxu0
    %v503 = vadd.f32 %v141, %v498
    %v504 = vxor.u32 %v503, 2147483648
    %v505 = vmul.f32 %v504, 1.442695
    %v506 = vpow.pop %v505
    %v507 = vadd.f32 %v506, 1.0
    %v508 = vrcp.pop %v507
    %v509 = vmul.f32 1.0, %v508
    %v510 = vtanh.pop %v503
    %v511 = vmul.f32 %v509, %v449
    %513 = vrot.lane.b32.xlu0 %v510, 32
    %v514 = vpop.permute.xlu0 %513
    %v516 = vmul.f32 %v509, %v514
    %518 = vrot.lane.b32.xlu0 %v516, 32
    %v519 = vpop.permute.xlu0 %518
    %v521 = vadd.f32 %v511, %v519
    %v522 = vtanh.pop %v521
    %524 = vrot.lane.b32.xlu0 %v522, 32
    %v525 = vpop.permute.xlu0 %524
    %v527 = vmul.f32 %v509, %v525
    %v528 = vpack.c.bf16 %v527, %v527
    %530 = vrot.lane.b32.xlu0 %v528, 64
    %v531 = vpop.permute.xlu0 %530
    %v533 = vsel %vm171, %v531, 0
    %535 = vmatprep.subr.bf16.mxu0 0
    %536 = vmatpush1.bf16.msra.mxu0 %v167
    %537 = vmatprep.subr.bf16.mxu0 0
    %538 = vmatpush1.bf16.msra.mxu0 %v168
    %539 = vmatprep.subr.bf16.mxu0 0
    %540 = vmatpush1.bf16.msra.mxu0 0
    %541 = vmatprep.subr.bf16.mxu0 0
    %542 = vmatpush1.bf16.msra.mxu0 0
    %543 = vmatprep.subr.bf16.mxu0 0
    %544 = vmatpush1.bf16.msra.mxu0 0
    %545 = vmatprep.subr.bf16.mxu0 0
    %546 = vmatpush1.bf16.msra.mxu0 0
    %547 = vmatprep.subr.bf16.mxu0 0
    %548 = vmatpush1.bf16.msra.mxu0 0
    %549 = vmatprep.subr.bf16.mxu0 0
    %550 = vmatpush1.bf16.msra.mxu0 0
    %551 = vmatprep.subr.bf16.mxu0 0
    %552 = vmatpush1.bf16.msra.mxu0 0
    %553 = vmatprep.subr.bf16.mxu0 0
    %554 = vmatpush1.bf16.msra.mxu0 0
    %555 = vmatprep.subr.bf16.mxu0 0
    %556 = vmatpush1.bf16.msra.mxu0 0
    %557 = vmatprep.subr.bf16.mxu0 0
    %558 = vmatpush1.bf16.msra.mxu0 0
    %559 = vmatprep.subr.bf16.mxu0 0
    %560 = vmatpush1.bf16.msra.mxu0 0
    %561 = vmatprep.subr.bf16.mxu0 0
    %562 = vmatpush1.bf16.msra.mxu0 0
    %563 = vmatprep.subr.bf16.mxu0 0
    %564 = vmatpush1.bf16.msra.mxu0 0
    %565 = vmatprep.subr.bf16.mxu0 0
    %566 = vmatpush1.bf16.msra.mxu0 0
    %567 = vmatprep.mubr.bf16.mxu0 0
    %568 = vmatmul.mubr.bf16.gmra.mrb[0].mxu0 %v533
    %v569 = vpop.f32.mrb[0].mxu0
    %v570 = vadd.f32 0.0, %v569
    %v571 = vpop.f32.mrb[0].mxu0
    %v572 = vpop.f32.mrb[0].mxu0
    %v573 = vpop.f32.mrb[0].mxu0
    %574 = vdwg.mxu0
    %v575 = vadd.f32 %v144, %v570
    %v576 = vxor.u32 %v575, 2147483648
    %v577 = vmul.f32 %v576, 1.442695
    %v578 = vpow.pop %v577
    %v579 = vadd.f32 %v578, 1.0
    %v580 = vrcp.pop %v579
    %v581 = vmul.f32 1.0, %v580
    %v582 = vtanh.pop %v575
    %v583 = vmul.f32 %v581, %v521
    %585 = vrot.lane.b32.xlu0 %v582, 32
    %v586 = vpop.permute.xlu0 %585
    %v588 = vmul.f32 %v581, %v586
    %590 = vrot.lane.b32.xlu0 %v588, 32
    %v591 = vpop.permute.xlu0 %590
    %v593 = vadd.f32 %v583, %v591
    %v594 = vtanh.pop %v593
    %596 = vrot.lane.b32.xlu0 %v594, 32
    %v597 = vpop.permute.xlu0 %596
    %v599 = vmul.f32 %v581, %v597
    %v600 = vpack.c.bf16 %v599, %v599
    %602 = vrot.lane.b32.xlu0 %v600, 64
    %v603 = vpop.permute.xlu0 %602
    %v605 = vsel %vm171, %v603, 0
    %607 = vmatprep.subr.bf16.mxu0 0
    %608 = vmatpush1.bf16.msra.mxu0 %v167
    %609 = vmatprep.subr.bf16.mxu0 0
    %610 = vmatpush1.bf16.msra.mxu0 %v168
    %611 = vmatprep.subr.bf16.mxu0 0
    %612 = vmatpush1.bf16.msra.mxu0 0
    %613 = vmatprep.subr.bf16.mxu0 0
    %614 = vmatpush1.bf16.msra.mxu0 0
    %615 = vmatprep.subr.bf16.mxu0 0
    %616 = vmatpush1.bf16.msra.mxu0 0
    %617 = vmatprep.subr.bf16.mxu0 0
    %618 = vmatpush1.bf16.msra.mxu0 0
    %619 = vmatprep.subr.bf16.mxu0 0
    %620 = vmatpush1.bf16.msra.mxu0 0
    %621 = vmatprep.subr.bf16.mxu0 0
    %622 = vmatpush1.bf16.msra.mxu0 0
    %623 = vmatprep.subr.bf16.mxu0 0
    %624 = vmatpush1.bf16.msra.mxu0 0
    %625 = vmatprep.subr.bf16.mxu0 0
    %626 = vmatpush1.bf16.msra.mxu0 0
    %627 = vmatprep.subr.bf16.mxu0 0
    %628 = vmatpush1.bf16.msra.mxu0 0
    %629 = vmatprep.subr.bf16.mxu0 0
    %630 = vmatpush1.bf16.msra.mxu0 0
    %631 = vmatprep.subr.bf16.mxu0 0
    %632 = vmatpush1.bf16.msra.mxu0 0
    %633 = vmatprep.subr.bf16.mxu0 0
    %634 = vmatpush1.bf16.msra.mxu0 0
    %635 = vmatprep.subr.bf16.mxu0 0
    %636 = vmatpush1.bf16.msra.mxu0 0
    %637 = vmatprep.subr.bf16.mxu0 0
    %638 = vmatpush1.bf16.msra.mxu0 0
    %639 = vmatprep.mubr.bf16.mxu0 0
    %640 = vmatmul.mubr.bf16.gmra.mrb[0].mxu0 %v605
    %v641 = vpop.f32.mrb[0].mxu0
    %v642 = vadd.f32 0.0, %v641
    %v643 = vpop.f32.mrb[0].mxu0
    %v644 = vpop.f32.mrb[0].mxu0
    %v645 = vpop.f32.mrb[0].mxu0
    %646 = vdwg.mxu0
    %v647 = vadd.f32 %v149, %v642
    %v648 = vxor.u32 %v647, 2147483648
    %v649 = vmul.f32 %v648, 1.442695
    %v650 = vpow.pop %v649
    %v651 = vadd.f32 %v650, 1.0
    %v652 = vrcp.pop %v651
    %v653 = vmul.f32 1.0, %v652
    %v654 = vtanh.pop %v647
    %v655 = vmul.f32 %v653, %v593
    %657 = vrot.lane.b32.xlu0 %v654, 32
    %v658 = vpop.permute.xlu0 %657
    %v660 = vmul.f32 %v653, %v658
    %662 = vrot.lane.b32.xlu0 %v660, 32
    %v663 = vpop.permute.xlu0 %662
    %v665 = vadd.f32 %v655, %v663
    %v666 = vtanh.pop %v665
    %668 = vrot.lane.b32.xlu0 %v666, 32
    %v669 = vpop.permute.xlu0 %668
    %v671 = vmul.f32 %v653, %v669
    %v672 = vpack.c.bf16 %v671, %v671
    %674 = vrot.lane.b32.xlu0 %v672, 64
    %v675 = vpop.permute.xlu0 %674
    %v677 = vsel %vm171, %v675, 0
    %679 = vmatprep.subr.bf16.mxu0 0
    %680 = vmatpush1.bf16.msra.mxu0 %v167
    %681 = vmatprep.subr.bf16.mxu0 0
    %682 = vmatpush1.bf16.msra.mxu0 %v168
    %683 = vmatprep.subr.bf16.mxu0 0
    %684 = vmatpush1.bf16.msra.mxu0 0
    %685 = vmatprep.subr.bf16.mxu0 0
    %686 = vmatpush1.bf16.msra.mxu0 0
    %687 = vmatprep.subr.bf16.mxu0 0
    %688 = vmatpush1.bf16.msra.mxu0 0
    %689 = vmatprep.subr.bf16.mxu0 0
    %690 = vmatpush1.bf16.msra.mxu0 0
    %691 = vmatprep.subr.bf16.mxu0 0
    %692 = vmatpush1.bf16.msra.mxu0 0
    %693 = vmatprep.subr.bf16.mxu0 0
    %694 = vmatpush1.bf16.msra.mxu0 0
    %695 = vmatprep.subr.bf16.mxu0 0
    %696 = vmatpush1.bf16.msra.mxu0 0
    %697 = vmatprep.subr.bf16.mxu0 0
    %698 = vmatpush1.bf16.msra.mxu0 0
    %699 = vmatprep.subr.bf16.mxu0 0
    %700 = vmatpush1.bf16.msra.mxu0 0
    %701 = vmatprep.subr.bf16.mxu0 0
    %702 = vmatpush1.bf16.msra.mxu0 0
    %703 = vmatprep.subr.bf16.mxu0 0
    %704 = vmatpush1.bf16.msra.mxu0 0
    %705 = vmatprep.subr.bf16.mxu0 0
    %706 = vmatpush1.bf16.msra.mxu0 0
    %707 = vmatprep.subr.bf16.mxu0 0
    %708 = vmatpush1.bf16.msra.mxu0 0
    %709 = vmatprep.subr.bf16.mxu0 0
    %710 = vmatpush1.bf16.msra.mxu0 0
    %711 = vmatprep.mubr.bf16.mxu0 0
    %712 = vmatmul.mubr.bf16.gmra.mrb[0].mxu0 %v677
    %v713 = vpop.f32.mrb[0].mxu0
    %v714 = vadd.f32 0.0, %v713
    %v715 = vpop.f32.mrb[0].mxu0
    %v716 = vpop.f32.mrb[0].mxu0
    %v717 = vpop.f32.mrb[0].mxu0
    %718 = vdwg.mxu0
    %v719 = vadd.f32 %v152, %v714
    %v720 = vxor.u32 %v719, 2147483648
    %v721 = vmul.f32 %v720, 1.442695
    %v722 = vpow.pop %v721
    %v723 = vadd.f32 %v722, 1.0
    %v724 = vrcp.pop %v723
    %v725 = vmul.f32 1.0, %v724
    %v726 = vtanh.pop %v719
    %v727 = vmul.f32 %v725, %v665
    %729 = vrot.lane.b32.xlu0 %v726, 32
    %v730 = vpop.permute.xlu0 %729
    %v732 = vmul.f32 %v725, %v730
    %734 = vrot.lane.b32.xlu0 %v732, 32
    %v735 = vpop.permute.xlu0 %734
    %v737 = vadd.f32 %v727, %v735
    %v738 = vtanh.pop %v737
    %740 = vrot.lane.b32.xlu0 %v738, 32
    %v741 = vpop.permute.xlu0 %740
    %v743 = vmul.f32 %v725, %v741
    %v744 = vld [vmem:[%s4] sm:$0xff]
    %v745 = vld [vmem:[%s4 + $0x8] sm:$0xff]
    %v746 = vld [vmem:[%s4 + $0x10] sm:$0xff]
    %v747 = vld [vmem:[%s4 + $0x18] sm:$0xff]
    %v748 = vld [vmem:[%s5] sm:$0x1]
    %v750 = vlaneseq
    %v751 = vshrl.u32 %v750, 7
    %v752 = vsub.s32 0, %v751
    %v753 = vrot.slane %v748, %v752
    %756 = vrot.lane.b32.xlu0 %v743, 64
    %v757 = vpop.permute.xlu0 %756
    %v758 = vsel %vm171, %v757, 0
    %760 = vmatprep.subr.mxu0 0.0
    %761 = vmatpush1.msra.mxu0 %v744
    %762 = vmatprep.subr.mxu0 0.0
    %763 = vmatpush1.msra.mxu0 %v745
    %764 = vmatprep.subr.mxu0 0.0
    %765 = vmatpush1.msra.mxu0 %v746
    %766 = vmatprep.subr.mxu0 0.0
    %767 = vmatpush1.msra.mxu0 %v747
    %768 = vmatprep.subr.mxu0 0.0
    %769 = vmatpush1.msra.mxu0 0.0
    %770 = vmatprep.subr.mxu0 0.0
    %771 = vmatpush1.msra.mxu0 0.0
    %772 = vmatprep.subr.mxu0 0.0
    %773 = vmatpush1.msra.mxu0 0.0
    %774 = vmatprep.subr.mxu0 0.0
    %775 = vmatpush1.msra.mxu0 0.0
    %776 = vmatprep.subr.mxu0 0.0
    %777 = vmatpush1.msra.mxu0 0.0
    %778 = vmatprep.subr.mxu0 0.0
    %779 = vmatpush1.msra.mxu0 0.0
    %780 = vmatprep.subr.mxu0 0.0
    %781 = vmatpush1.msra.mxu0 0.0
    %782 = vmatprep.subr.mxu0 0.0
    %783 = vmatpush1.msra.mxu0 0.0
    %784 = vmatprep.subr.mxu0 0.0
    %785 = vmatpush1.msra.mxu0 0.0
    %786 = vmatprep.subr.mxu0 0.0
    %787 = vmatpush1.msra.mxu0 0.0
    %788 = vmatprep.subr.mxu0 0.0
    %789 = vmatpush1.msra.mxu0 0.0
    %790 = vmatprep.subr.mxu0 0.0
    %791 = vmatpush1.msra.mxu0 0.0
    %792 = vmatprep.subr.mxu0 0.0
    %793 = vmatpush1.msra.mxu0 0.0
    %794 = vmatprep.subr.mxu0 0.0
    %795 = vmatpush1.msra.mxu0 0.0
    %796 = vmatprep.subr.mxu0 0.0
    %797 = vmatpush1.msra.mxu0 0.0
    %798 = vmatprep.subr.mxu0 0.0
    %799 = vmatpush1.msra.mxu0 0.0
    %800 = vmatprep.subr.mxu0 0.0
    %801 = vmatpush1.msra.mxu0 0.0
    %802 = vmatprep.subr.mxu0 0.0
    %803 = vmatpush1.msra.mxu0 0.0
    %804 = vmatprep.subr.mxu0 0.0
    %805 = vmatpush1.msra.mxu0 0.0
    %806 = vmatprep.subr.mxu0 0.0
    %807 = vmatpush1.msra.mxu0 0.0
    %808 = vmatprep.subr.mxu0 0.0
    %809 = vmatpush1.msra.mxu0 0.0
    %810 = vmatprep.subr.mxu0 0.0
    %811 = vmatpush1.msra.mxu0 0.0
    %812 = vmatprep.subr.mxu0 0.0
    %813 = vmatpush1.msra.mxu0 0.0
    %814 = vmatprep.subr.mxu0 0.0
    %815 = vmatpush1.msra.mxu0 0.0
    %816 = vmatprep.subr.mxu0 0.0
    %817 = vmatpush1.msra.mxu0 0.0
    %818 = vmatprep.subr.mxu0 0.0
    %819 = vmatpush1.msra.mxu0 0.0
    %820 = vmatprep.subr.mxu0 0.0
    %821 = vmatpush1.msra.mxu0 0.0
    %822 = vmatprep.subr.mxu0 0.0
    %823 = vmatpush1.msra.mxu0 0.0
    %824 = vmatprep.mubr.f32.mxu0 0.0
    %825 = vmatmul.mubr.f32.gmra.mrb[0].mxu0 %v758
    %v826 = vpop.f32.mrb[0].mxu0
    %v827 = vadd.f32 %v753, %v826
    %v828 = vpop.f32.mrb[0].mxu0
    %829 = vdwg.mxu0
    %830 = vst [vmem:[#allocation5] sm:$0xff] %v827
    // Predicated region
    $region30: #{tpu_custom_call.1} parent=1 // pred_check
      _
    $region31: #{tpu_custom_call.1} parent=1 // pred_check_branch
      %832 = sbr.rel (0) target = $region33
    $region32: #{tpu_custom_call.1} parent=1 // pred_region
      %s834 = ssub.s32 128, 128
      %835 = vsyncadd [#allocation4], %s834
      %s837 = sshll.u32 [#allocation5], 4
      %s838 = int_to_ptr.vmem [resolvable:$true] %s837
      %840 = dma.vmem_to_hbm [thread:$0]  %s838, 128, %s6, [#allocation4]
    $region33: #{tpu_custom_call.1} parent=1 // pred_fallthru
      _
    // Predicated region
    $region34: #{tpu_custom_call.1} parent=1 // pred_check
      _
    $region35: #{tpu_custom_call.1} parent=1 // pred_check_branch
      %842 = sbr.rel (0) target = $region37
    $region36: #{tpu_custom_call.1} parent=1 // pred_region
      %843 = dma.done [#allocation4], 128
    $region37: #{tpu_custom_call.1} parent=1 // pred_fallthru
      _
    %844 = vsyncpa [#allocation3], 1
    %845 = vsyncpa [#allocation4], 1

</llo_original>
